<compile_context>
chip_gen: v7x
topology: tpu7x:2x2x1
jax: 0.10.0
libtpu: 0.0.40
codegen_flags: <defaults>
</compile_context>

<pallas_src>
import functools

import jax
import jax.numpy as jnp
from jax.experimental import pallas as pl
from jax.experimental.pallas import tpu as pltpu


EPS = 1e-5      # nn.BatchNorm2d default
ALPHA = 0.33    # nn.LeakyReLU negative_slope from the module


# -----------------------------------------------------------------------------
# Pallas kernel: direct conv via deferred-shift VPU FMAs + folded BN + LeakyReLU
# -----------------------------------------------------------------------------
def conv_bn_lrelu_kernel(w_ref, shift_ref, x_ref, o_ref, *,
                         cin, kh, kw, oh, ow, cout, alpha):
    # w_ref:     SMEM (COUT*CIN*KH*KW,) f32   BN-scale-folded conv weights
    # shift_ref: SMEM (COUT,)           f32   folded BN shift (incl. conv bias)
    # x_ref:     VMEM (N, CIN, H, W)    f32   input, NCHW
    # o_ref:     VMEM (N, COUT, OH, OW) f32   output, NCHW
    n = o_ref.shape[0]
    w_full = x_ref.shape[3]

    # One accumulator per (cout, kw); lane shift by `iw` is deferred to the
    # epilogue, so the hot loop does only scalar-broadcast FMAs.
    accs = [[jnp.zeros((n, oh, w_full), jnp.float32) for _ in range(kw)]
            for _ in range(cout)]

    for ci in range(cin):
        for ih in range(kh):
            # single VMEM load per (ci, ih): (N, OH, W)
            xrow = x_ref[:, ci, ih:ih + oh, :]
            for co in range(cout):
                for iw in range(kw):
                    widx = ((co * cin + ci) * kh + ih) * kw + iw
                    accs[co][iw] = accs[co][iw] + w_ref[widx] * xrow

    for co in range(cout):
        # Apply the deferred kw lane-shifts (6 static slices total), add the
        # folded BN shift, then LeakyReLU, and store NCHW.
        y = accs[co][0][:, :, 0:ow] + shift_ref[co]
        for iw in range(1, kw):
            y = y + accs[co][iw][:, :, iw:iw + ow]
        o_ref[:, co, :, :] = jnp.where(y >= 0.0, y, alpha * y)


# -----------------------------------------------------------------------------
# Jitted wrapper: BN folding + cast + pallas_call fused into one launch.
# NOTE: folding assumes eval-mode BatchNorm (running_mean / running_var);
# training-mode batch statistics are intentionally NOT implemented here.
# -----------------------------------------------------------------------------
@jax.jit
def conv_bn_lrelu(x_nchw, w_oihw, conv_bias, gamma, beta, running_mean,
                  running_var):
    N, CIN, H, W = x_nchw.shape
    COUT, _, KH, KW = w_oihw.shape
    OH, OW = H - KH + 1, W - KW + 1

    # Eval-mode BN fold:
    #   y = (conv(x, w) + b - mean) * gamma / sqrt(var + eps) + beta
    #     = conv(x, w * scale) + shift
    bn_scale = (gamma * jax.lax.rsqrt(running_var + EPS)).astype(jnp.float32)
    w_scaled = (w_oihw.astype(jnp.float32)
                * bn_scale[:, None, None, None]).reshape(-1)
    shift = ((conv_bias - running_mean) * bn_scale + beta).astype(jnp.float32)

    kernel = functools.partial(conv_bn_lrelu_kernel, cin=CIN, kh=KH, kw=KW,
                               oh=OH, ow=OW, cout=COUT, alpha=ALPHA)

    flops = 2 * N * OH * OW * CIN * KH * KW * COUT
    bytes_accessed = (x_nchw.size + w_scaled.size + shift.size
                      + N * COUT * OH * OW) * 4

    # Single kernel invocation (no grid): every operand is one full block
    # (~6 KB in, ~3 KB out — far under any generation's scoped VMEM limit).
    return pl.pallas_call(
        kernel,
        out_shape=jax.ShapeDtypeStruct((N, COUT, OH, OW), jnp.float32),
        in_specs=[
            pl.BlockSpec(memory_space=pltpu.MemorySpace.SMEM),   # folded weights
            pl.BlockSpec(memory_space=pltpu.MemorySpace.SMEM),   # folded shift
            pl.BlockSpec(memory_space=pltpu.MemorySpace.VMEM),   # x (whole array)
        ],
        out_specs=pl.BlockSpec(memory_space=pltpu.MemorySpace.VMEM),
        cost_estimate=pl.CostEstimate(flops=flops, transcendentals=0,
                                      bytes_accessed=bytes_accessed),
    )(w_scaled, shift, x_nchw.astype(jnp.float32))


# -----------------------------------------------------------------------------
# Pure-JAX reference (same semantics) for a correctness check
# -----------------------------------------------------------------------------
@jax.jit
def reference(x, w, b, gamma, beta, rm, rv):
    y = jax.lax.conv_general_dilated(
        x, w, window_strides=(1, 1), padding="VALID",
        dimension_numbers=("NCHW", "OIHW", "NCHW"),
        preferred_element_type=jnp.float32)
    y = y + b[None, :, None, None]
    y = (y - rm[None, :, None, None]) / jnp.sqrt(rv[None, :, None, None] + EPS)
    y = y * gamma[None, :, None, None] + beta[None, :, None, None]
    return jnp.where(y >= 0.0, y, ALPHA * y)


if __name__ == "__main__":
    N, CIN, H, W = 2, 3, 16, 16
    COUT, KH, KW = 2, 3, 3

    key = jax.random.PRNGKey(0)
    kx, kw_key, kb = jax.random.split(key, 3)

    # deterministic synthetic parameters (shapes per nn.Conv2d / nn.BatchNorm2d)
    x = jax.random.normal(kx, (N, CIN, H, W), jnp.float32)
    w = jax.random.normal(kw_key, (COUT, CIN, KH, KW), jnp.float32) * 0.2
    b = jax.random.normal(kb, (COUT,), jnp.float32) * 0.1
    gamma = jnp.array([1.1, 0.9], jnp.float32)
    beta = jnp.array([0.05, -0.05], jnp.float32)
    running_mean = jnp.array([0.02, -0.03], jnp.float32)
    running_var = jnp.array([0.8, 1.2], jnp.float32)

    out = jax.block_until_ready(
        conv_bn_lrelu(x, w, b, gamma, beta, running_mean, running_var))
    ref = jax.block_until_ready(
        reference(x, w, b, gamma, beta, running_mean, running_var))

    assert out.shape == (N, COUT, H - KH + 1, W - KW + 1), out.shape
    max_err = float(jnp.max(jnp.abs(out - ref)))
    # Tight tolerance: all-f32 path with only 27-term accumulation must match
    # the XLA conv reference to ~1e-5.
    assert jnp.allclose(out, ref, rtol=1e-5, atol=1e-5), max_err

    print("KERNEL_OK")
</pallas_src>

<mosaic_0001>
module attributes {stable_mosaic.version = 11 : i64} {
  func.func @conv_bn_lrelu_kernel(%arg0: memref<54xf32, #tpu.memory_space<smem>>, %arg1: memref<2xf32, #tpu.memory_space<smem>>, %arg2: memref<2x3x16x16xf32, #tpu.memory_space<vmem>>, %arg3: memref<2x2x14x14xf32, #tpu.memory_space<vmem>>) attributes {dimension_semantics = [], scalar_prefetch = 0 : i64, scratch_operands = 0 : i64, tpu.core_type = #tpu.core_type<tc>} {
    %cst = arith.constant 0.000000e+00 : f32
    %0 = vector.broadcast %cst : f32 to vector<2x14x16xf32>
    %cst_0 = arith.constant 0.000000e+00 : f32
    %1 = vector.broadcast %cst_0 : f32 to vector<2x14x16xf32>
    %cst_1 = arith.constant 0.000000e+00 : f32
    %2 = vector.broadcast %cst_1 : f32 to vector<2x14x16xf32>
    %cst_2 = arith.constant 0.000000e+00 : f32
    %3 = vector.broadcast %cst_2 : f32 to vector<2x14x16xf32>
    %cst_3 = arith.constant 0.000000e+00 : f32
    %4 = vector.broadcast %cst_3 : f32 to vector<2x14x16xf32>
    %cst_4 = arith.constant 0.000000e+00 : f32
    %5 = vector.broadcast %cst_4 : f32 to vector<2x14x16xf32>
    %c0 = arith.constant 0 : index
    %c0_5 = arith.constant 0 : index
    %c0_6 = arith.constant 0 : index
    %c0_7 = arith.constant 0 : index
    %6 = vector.load %arg2[%c0, %c0_5, %c0_6, %c0_7] : memref<2x3x16x16xf32, #tpu.memory_space<vmem>>, vector<2x1x14x16xf32>
    %7 = vector.shape_cast %6 : vector<2x1x14x16xf32> to vector<2x14x16xf32>
    %c0_8 = arith.constant 0 : index
    %8 = memref.load %arg0[%c0_8] : memref<54xf32, #tpu.memory_space<smem>>
    %9 = vector.broadcast %8 : f32 to vector<2x14x16xf32>
    %10 = arith.mulf %9, %7 : vector<2x14x16xf32>
    %11 = arith.addf %0, %10 : vector<2x14x16xf32>
    %c1 = arith.constant 1 : index
    %12 = memref.load %arg0[%c1] : memref<54xf32, #tpu.memory_space<smem>>
    %13 = vector.broadcast %12 : f32 to vector<2x14x16xf32>
    %14 = arith.mulf %13, %7 : vector<2x14x16xf32>
    %15 = arith.addf %1, %14 : vector<2x14x16xf32>
    %c2 = arith.constant 2 : index
    %16 = memref.load %arg0[%c2] : memref<54xf32, #tpu.memory_space<smem>>
    %17 = vector.broadcast %16 : f32 to vector<2x14x16xf32>
    %18 = arith.mulf %17, %7 : vector<2x14x16xf32>
    %19 = arith.addf %2, %18 : vector<2x14x16xf32>
    %c27 = arith.constant 27 : index
    %20 = memref.load %arg0[%c27] : memref<54xf32, #tpu.memory_space<smem>>
    %21 = vector.broadcast %20 : f32 to vector<2x14x16xf32>
    %22 = arith.mulf %21, %7 : vector<2x14x16xf32>
    %23 = arith.addf %3, %22 : vector<2x14x16xf32>
    %c28 = arith.constant 28 : index
    %24 = memref.load %arg0[%c28] : memref<54xf32, #tpu.memory_space<smem>>
    %25 = vector.broadcast %24 : f32 to vector<2x14x16xf32>
    %26 = arith.mulf %25, %7 : vector<2x14x16xf32>
    %27 = arith.addf %4, %26 : vector<2x14x16xf32>
    %c29 = arith.constant 29 : index
    %28 = memref.load %arg0[%c29] : memref<54xf32, #tpu.memory_space<smem>>
    %29 = vector.broadcast %28 : f32 to vector<2x14x16xf32>
    %30 = arith.mulf %29, %7 : vector<2x14x16xf32>
    %31 = arith.addf %5, %30 : vector<2x14x16xf32>
    %c0_9 = arith.constant 0 : index
    %c0_10 = arith.constant 0 : index
    %c1_11 = arith.constant 1 : index
    %c0_12 = arith.constant 0 : index
    %32 = vector.load %arg2[%c0_9, %c0_10, %c1_11, %c0_12] : memref<2x3x16x16xf32, #tpu.memory_space<vmem>>, vector<2x1x14x16xf32>
    %33 = vector.shape_cast %32 : vector<2x1x14x16xf32> to vector<2x14x16xf32>
    %c3 = arith.constant 3 : index
    %34 = memref.load %arg0[%c3] : memref<54xf32, #tpu.memory_space<smem>>
    %35 = vector.broadcast %34 : f32 to vector<2x14x16xf32>
    %36 = arith.mulf %35, %33 : vector<2x14x16xf32>
    %37 = arith.addf %11, %36 : vector<2x14x16xf32>
    %c4 = arith.constant 4 : index
    %38 = memref.load %arg0[%c4] : memref<54xf32, #tpu.memory_space<smem>>
    %39 = vector.broadcast %38 : f32 to vector<2x14x16xf32>
    %40 = arith.mulf %39, %33 : vector<2x14x16xf32>
    %41 = arith.addf %15, %40 : vector<2x14x16xf32>
    %c5 = arith.constant 5 : index
    %42 = memref.load %arg0[%c5] : memref<54xf32, #tpu.memory_space<smem>>
    %43 = vector.broadcast %42 : f32 to vector<2x14x16xf32>
    %44 = arith.mulf %43, %33 : vector<2x14x16xf32>
    %45 = arith.addf %19, %44 : vector<2x14x16xf32>
    %c30 = arith.constant 30 : index
    %46 = memref.load %arg0[%c30] : memref<54xf32, #tpu.memory_space<smem>>
    %47 = vector.broadcast %46 : f32 to vector<2x14x16xf32>
    %48 = arith.mulf %47, %33 : vector<2x14x16xf32>
    %49 = arith.addf %23, %48 : vector<2x14x16xf32>
    %c31 = arith.constant 31 : index
    %50 = memref.load %arg0[%c31] : memref<54xf32, #tpu.memory_space<smem>>
    %51 = vector.broadcast %50 : f32 to vector<2x14x16xf32>
    %52 = arith.mulf %51, %33 : vector<2x14x16xf32>
    %53 = arith.addf %27, %52 : vector<2x14x16xf32>
    %c32 = arith.constant 32 : index
    %54 = memref.load %arg0[%c32] : memref<54xf32, #tpu.memory_space<smem>>
    %55 = vector.broadcast %54 : f32 to vector<2x14x16xf32>
    %56 = arith.mulf %55, %33 : vector<2x14x16xf32>
    %57 = arith.addf %31, %56 : vector<2x14x16xf32>
    %c0_13 = arith.constant 0 : index
    %c0_14 = arith.constant 0 : index
    %c2_15 = arith.constant 2 : index
    %c0_16 = arith.constant 0 : index
    %58 = vector.load %arg2[%c0_13, %c0_14, %c2_15, %c0_16] : memref<2x3x16x16xf32, #tpu.memory_space<vmem>>, vector<2x1x14x16xf32>
    %59 = vector.shape_cast %58 : vector<2x1x14x16xf32> to vector<2x14x16xf32>
    %c6 = arith.constant 6 : index
    %60 = memref.load %arg0[%c6] : memref<54xf32, #tpu.memory_space<smem>>
    %61 = vector.broadcast %60 : f32 to vector<2x14x16xf32>
    %62 = arith.mulf %61, %59 : vector<2x14x16xf32>
    %63 = arith.addf %37, %62 : vector<2x14x16xf32>
    %c7 = arith.constant 7 : index
    %64 = memref.load %arg0[%c7] : memref<54xf32, #tpu.memory_space<smem>>
    %65 = vector.broadcast %64 : f32 to vector<2x14x16xf32>
    %66 = arith.mulf %65, %59 : vector<2x14x16xf32>
    %67 = arith.addf %41, %66 : vector<2x14x16xf32>
    %c8 = arith.constant 8 : index
    %68 = memref.load %arg0[%c8] : memref<54xf32, #tpu.memory_space<smem>>
    %69 = vector.broadcast %68 : f32 to vector<2x14x16xf32>
    %70 = arith.mulf %69, %59 : vector<2x14x16xf32>
    %71 = arith.addf %45, %70 : vector<2x14x16xf32>
    %c33 = arith.constant 33 : index
    %72 = memref.load %arg0[%c33] : memref<54xf32, #tpu.memory_space<smem>>
    %73 = vector.broadcast %72 : f32 to vector<2x14x16xf32>
    %74 = arith.mulf %73, %59 : vector<2x14x16xf32>
    %75 = arith.addf %49, %74 : vector<2x14x16xf32>
    %c34 = arith.constant 34 : index
    %76 = memref.load %arg0[%c34] : memref<54xf32, #tpu.memory_space<smem>>
    %77 = vector.broadcast %76 : f32 to vector<2x14x16xf32>
    %78 = arith.mulf %77, %59 : vector<2x14x16xf32>
    %79 = arith.addf %53, %78 : vector<2x14x16xf32>
    %c35 = arith.constant 35 : index
    %80 = memref.load %arg0[%c35] : memref<54xf32, #tpu.memory_space<smem>>
    %81 = vector.broadcast %80 : f32 to vector<2x14x16xf32>
    %82 = arith.mulf %81, %59 : vector<2x14x16xf32>
    %83 = arith.addf %57, %82 : vector<2x14x16xf32>
    %c0_17 = arith.constant 0 : index
    %c1_18 = arith.constant 1 : index
    %c0_19 = arith.constant 0 : index
    %c0_20 = arith.constant 0 : index
    %84 = vector.load %arg2[%c0_17, %c1_18, %c0_19, %c0_20] : memref<2x3x16x16xf32, #tpu.memory_space<vmem>>, vector<2x1x14x16xf32>
    %85 = vector.shape_cast %84 : vector<2x1x14x16xf32> to vector<2x14x16xf32>
    %c9 = arith.constant 9 : index
    %86 = memref.load %arg0[%c9] : memref<54xf32, #tpu.memory_space<smem>>
    %87 = vector.broadcast %86 : f32 to vector<2x14x16xf32>
    %88 = arith.mulf %87, %85 : vector<2x14x16xf32>
    %89 = arith.addf %63, %88 : vector<2x14x16xf32>
    %c10 = arith.constant 10 : index
    %90 = memref.load %arg0[%c10] : memref<54xf32, #tpu.memory_space<smem>>
    %91 = vector.broadcast %90 : f32 to vector<2x14x16xf32>
    %92 = arith.mulf %91, %85 : vector<2x14x16xf32>
    %93 = arith.addf %67, %92 : vector<2x14x16xf32>
    %c11 = arith.constant 11 : index
    %94 = memref.load %arg0[%c11] : memref<54xf32, #tpu.memory_space<smem>>
    %95 = vector.broadcast %94 : f32 to vector<2x14x16xf32>
    %96 = arith.mulf %95, %85 : vector<2x14x16xf32>
    %97 = arith.addf %71, %96 : vector<2x14x16xf32>
    %c36 = arith.constant 36 : index
    %98 = memref.load %arg0[%c36] : memref<54xf32, #tpu.memory_space<smem>>
    %99 = vector.broadcast %98 : f32 to vector<2x14x16xf32>
    %100 = arith.mulf %99, %85 : vector<2x14x16xf32>
    %101 = arith.addf %75, %100 : vector<2x14x16xf32>
    %c37 = arith.constant 37 : index
    %102 = memref.load %arg0[%c37] : memref<54xf32, #tpu.memory_space<smem>>
    %103 = vector.broadcast %102 : f32 to vector<2x14x16xf32>
    %104 = arith.mulf %103, %85 : vector<2x14x16xf32>
    %105 = arith.addf %79, %104 : vector<2x14x16xf32>
    %c38 = arith.constant 38 : index
    %106 = memref.load %arg0[%c38] : memref<54xf32, #tpu.memory_space<smem>>
    %107 = vector.broadcast %106 : f32 to vector<2x14x16xf32>
    %108 = arith.mulf %107, %85 : vector<2x14x16xf32>
    %109 = arith.addf %83, %108 : vector<2x14x16xf32>
    %c0_21 = arith.constant 0 : index
    %c1_22 = arith.constant 1 : index
    %c1_23 = arith.constant 1 : index
    %c0_24 = arith.constant 0 : index
    %110 = vector.load %arg2[%c0_21, %c1_22, %c1_23, %c0_24] : memref<2x3x16x16xf32, #tpu.memory_space<vmem>>, vector<2x1x14x16xf32>
    %111 = vector.shape_cast %110 : vector<2x1x14x16xf32> to vector<2x14x16xf32>
    %c12 = arith.constant 12 : index
    %112 = memref.load %arg0[%c12] : memref<54xf32, #tpu.memory_space<smem>>
    %113 = vector.broadcast %112 : f32 to vector<2x14x16xf32>
    %114 = arith.mulf %113, %111 : vector<2x14x16xf32>
    %115 = arith.addf %89, %114 : vector<2x14x16xf32>
    %c13 = arith.constant 13 : index
    %116 = memref.load %arg0[%c13] : memref<54xf32, #tpu.memory_space<smem>>
    %117 = vector.broadcast %116 : f32 to vector<2x14x16xf32>
    %118 = arith.mulf %117, %111 : vector<2x14x16xf32>
    %119 = arith.addf %93, %118 : vector<2x14x16xf32>
    %c14 = arith.constant 14 : index
    %120 = memref.load %arg0[%c14] : memref<54xf32, #tpu.memory_space<smem>>
    %121 = vector.broadcast %120 : f32 to vector<2x14x16xf32>
    %122 = arith.mulf %121, %111 : vector<2x14x16xf32>
    %123 = arith.addf %97, %122 : vector<2x14x16xf32>
    %c39 = arith.constant 39 : index
    %124 = memref.load %arg0[%c39] : memref<54xf32, #tpu.memory_space<smem>>
    %125 = vector.broadcast %124 : f32 to vector<2x14x16xf32>
    %126 = arith.mulf %125, %111 : vector<2x14x16xf32>
    %127 = arith.addf %101, %126 : vector<2x14x16xf32>
    %c40 = arith.constant 40 : index
    %128 = memref.load %arg0[%c40] : memref<54xf32, #tpu.memory_space<smem>>
    %129 = vector.broadcast %128 : f32 to vector<2x14x16xf32>
    %130 = arith.mulf %129, %111 : vector<2x14x16xf32>
    %131 = arith.addf %105, %130 : vector<2x14x16xf32>
    %c41 = arith.constant 41 : index
    %132 = memref.load %arg0[%c41] : memref<54xf32, #tpu.memory_space<smem>>
    %133 = vector.broadcast %132 : f32 to vector<2x14x16xf32>
    %134 = arith.mulf %133, %111 : vector<2x14x16xf32>
    %135 = arith.addf %109, %134 : vector<2x14x16xf32>
    %c0_25 = arith.constant 0 : index
    %c1_26 = arith.constant 1 : index
    %c2_27 = arith.constant 2 : index
    %c0_28 = arith.constant 0 : index
    %136 = vector.load %arg2[%c0_25, %c1_26, %c2_27, %c0_28] : memref<2x3x16x16xf32, #tpu.memory_space<vmem>>, vector<2x1x14x16xf32>
    %137 = vector.shape_cast %136 : vector<2x1x14x16xf32> to vector<2x14x16xf32>
    %c15 = arith.constant 15 : index
    %138 = memref.load %arg0[%c15] : memref<54xf32, #tpu.memory_space<smem>>
    %139 = vector.broadcast %138 : f32 to vector<2x14x16xf32>
    %140 = arith.mulf %139, %137 : vector<2x14x16xf32>
    %141 = arith.addf %115, %140 : vector<2x14x16xf32>
    %c16 = arith.constant 16 : index
    %142 = memref.load %arg0[%c16] : memref<54xf32, #tpu.memory_space<smem>>
    %143 = vector.broadcast %142 : f32 to vector<2x14x16xf32>
    %144 = arith.mulf %143, %137 : vector<2x14x16xf32>
    %145 = arith.addf %119, %144 : vector<2x14x16xf32>
    %c17 = arith.constant 17 : index
    %146 = memref.load %arg0[%c17] : memref<54xf32, #tpu.memory_space<smem>>
    %147 = vector.broadcast %146 : f32 to vector<2x14x16xf32>
    %148 = arith.mulf %147, %137 : vector<2x14x16xf32>
    %149 = arith.addf %123, %148 : vector<2x14x16xf32>
    %c42 = arith.constant 42 : index
    %150 = memref.load %arg0[%c42] : memref<54xf32, #tpu.memory_space<smem>>
    %151 = vector.broadcast %150 : f32 to vector<2x14x16xf32>
    %152 = arith.mulf %151, %137 : vector<2x14x16xf32>
    %153 = arith.addf %127, %152 : vector<2x14x16xf32>
    %c43 = arith.constant 43 : index
    %154 = memref.load %arg0[%c43] : memref<54xf32, #tpu.memory_space<smem>>
    %155 = vector.broadcast %154 : f32 to vector<2x14x16xf32>
    %156 = arith.mulf %155, %137 : vector<2x14x16xf32>
    %157 = arith.addf %131, %156 : vector<2x14x16xf32>
    %c44 = arith.constant 44 : index
    %158 = memref.load %arg0[%c44] : memref<54xf32, #tpu.memory_space<smem>>
    %159 = vector.broadcast %158 : f32 to vector<2x14x16xf32>
    %160 = arith.mulf %159, %137 : vector<2x14x16xf32>
    %161 = arith.addf %135, %160 : vector<2x14x16xf32>
    %c0_29 = arith.constant 0 : index
    %c2_30 = arith.constant 2 : index
    %c0_31 = arith.constant 0 : index
    %c0_32 = arith.constant 0 : index
    %162 = vector.load %arg2[%c0_29, %c2_30, %c0_31, %c0_32] : memref<2x3x16x16xf32, #tpu.memory_space<vmem>>, vector<2x1x14x16xf32>
    %163 = vector.shape_cast %162 : vector<2x1x14x16xf32> to vector<2x14x16xf32>
    %c18 = arith.constant 18 : index
    %164 = memref.load %arg0[%c18] : memref<54xf32, #tpu.memory_space<smem>>
    %165 = vector.broadcast %164 : f32 to vector<2x14x16xf32>
    %166 = arith.mulf %165, %163 : vector<2x14x16xf32>
    %167 = arith.addf %141, %166 : vector<2x14x16xf32>
    %c19 = arith.constant 19 : index
    %168 = memref.load %arg0[%c19] : memref<54xf32, #tpu.memory_space<smem>>
    %169 = vector.broadcast %168 : f32 to vector<2x14x16xf32>
    %170 = arith.mulf %169, %163 : vector<2x14x16xf32>
    %171 = arith.addf %145, %170 : vector<2x14x16xf32>
    %c20 = arith.constant 20 : index
    %172 = memref.load %arg0[%c20] : memref<54xf32, #tpu.memory_space<smem>>
    %173 = vector.broadcast %172 : f32 to vector<2x14x16xf32>
    %174 = arith.mulf %173, %163 : vector<2x14x16xf32>
    %175 = arith.addf %149, %174 : vector<2x14x16xf32>
    %c45 = arith.constant 45 : index
    %176 = memref.load %arg0[%c45] : memref<54xf32, #tpu.memory_space<smem>>
    %177 = vector.broadcast %176 : f32 to vector<2x14x16xf32>
    %178 = arith.mulf %177, %163 : vector<2x14x16xf32>
    %179 = arith.addf %153, %178 : vector<2x14x16xf32>
    %c46 = arith.constant 46 : index
    %180 = memref.load %arg0[%c46] : memref<54xf32, #tpu.memory_space<smem>>
    %181 = vector.broadcast %180 : f32 to vector<2x14x16xf32>
    %182 = arith.mulf %181, %163 : vector<2x14x16xf32>
    %183 = arith.addf %157, %182 : vector<2x14x16xf32>
    %c47 = arith.constant 47 : index
    %184 = memref.load %arg0[%c47] : memref<54xf32, #tpu.memory_space<smem>>
    %185 = vector.broadcast %184 : f32 to vector<2x14x16xf32>
    %186 = arith.mulf %185, %163 : vector<2x14x16xf32>
    %187 = arith.addf %161, %186 : vector<2x14x16xf32>
    %c0_33 = arith.constant 0 : index
    %c2_34 = arith.constant 2 : index
    %c1_35 = arith.constant 1 : index
    %c0_36 = arith.constant 0 : index
    %188 = vector.load %arg2[%c0_33, %c2_34, %c1_35, %c0_36] : memref<2x3x16x16xf32, #tpu.memory_space<vmem>>, vector<2x1x14x16xf32>
    %189 = vector.shape_cast %188 : vector<2x1x14x16xf32> to vector<2x14x16xf32>
    %c21 = arith.constant 21 : index
    %190 = memref.load %arg0[%c21] : memref<54xf32, #tpu.memory_space<smem>>
    %191 = vector.broadcast %190 : f32 to vector<2x14x16xf32>
    %192 = arith.mulf %191, %189 : vector<2x14x16xf32>
    %193 = arith.addf %167, %192 : vector<2x14x16xf32>
    %c22 = arith.constant 22 : index
    %194 = memref.load %arg0[%c22] : memref<54xf32, #tpu.memory_space<smem>>
    %195 = vector.broadcast %194 : f32 to vector<2x14x16xf32>
    %196 = arith.mulf %195, %189 : vector<2x14x16xf32>
    %197 = arith.addf %171, %196 : vector<2x14x16xf32>
    %c23 = arith.constant 23 : index
    %198 = memref.load %arg0[%c23] : memref<54xf32, #tpu.memory_space<smem>>
    %199 = vector.broadcast %198 : f32 to vector<2x14x16xf32>
    %200 = arith.mulf %199, %189 : vector<2x14x16xf32>
    %201 = arith.addf %175, %200 : vector<2x14x16xf32>
    %c48 = arith.constant 48 : index
    %202 = memref.load %arg0[%c48] : memref<54xf32, #tpu.memory_space<smem>>
    %203 = vector.broadcast %202 : f32 to vector<2x14x16xf32>
    %204 = arith.mulf %203, %189 : vector<2x14x16xf32>
    %205 = arith.addf %179, %204 : vector<2x14x16xf32>
    %c49 = arith.constant 49 : index
    %206 = memref.load %arg0[%c49] : memref<54xf32, #tpu.memory_space<smem>>
    %207 = vector.broadcast %206 : f32 to vector<2x14x16xf32>
    %208 = arith.mulf %207, %189 : vector<2x14x16xf32>
    %209 = arith.addf %183, %208 : vector<2x14x16xf32>
    %c50 = arith.constant 50 : index
    %210 = memref.load %arg0[%c50] : memref<54xf32, #tpu.memory_space<smem>>
    %211 = vector.broadcast %210 : f32 to vector<2x14x16xf32>
    %212 = arith.mulf %211, %189 : vector<2x14x16xf32>
    %213 = arith.addf %187, %212 : vector<2x14x16xf32>
    %c0_37 = arith.constant 0 : index
    %c2_38 = arith.constant 2 : index
    %c2_39 = arith.constant 2 : index
    %c0_40 = arith.constant 0 : index
    %214 = vector.load %arg2[%c0_37, %c2_38, %c2_39, %c0_40] : memref<2x3x16x16xf32, #tpu.memory_space<vmem>>, vector<2x1x14x16xf32>
    %215 = vector.shape_cast %214 : vector<2x1x14x16xf32> to vector<2x14x16xf32>
    %c24 = arith.constant 24 : index
    %216 = memref.load %arg0[%c24] : memref<54xf32, #tpu.memory_space<smem>>
    %217 = vector.broadcast %216 : f32 to vector<2x14x16xf32>
    %218 = arith.mulf %217, %215 : vector<2x14x16xf32>
    %219 = arith.addf %193, %218 : vector<2x14x16xf32>
    %c25 = arith.constant 25 : index
    %220 = memref.load %arg0[%c25] : memref<54xf32, #tpu.memory_space<smem>>
    %221 = vector.broadcast %220 : f32 to vector<2x14x16xf32>
    %222 = arith.mulf %221, %215 : vector<2x14x16xf32>
    %223 = arith.addf %197, %222 : vector<2x14x16xf32>
    %c26 = arith.constant 26 : index
    %224 = memref.load %arg0[%c26] : memref<54xf32, #tpu.memory_space<smem>>
    %225 = vector.broadcast %224 : f32 to vector<2x14x16xf32>
    %226 = arith.mulf %225, %215 : vector<2x14x16xf32>
    %227 = arith.addf %201, %226 : vector<2x14x16xf32>
    %c51 = arith.constant 51 : index
    %228 = memref.load %arg0[%c51] : memref<54xf32, #tpu.memory_space<smem>>
    %229 = vector.broadcast %228 : f32 to vector<2x14x16xf32>
    %230 = arith.mulf %229, %215 : vector<2x14x16xf32>
    %231 = arith.addf %205, %230 : vector<2x14x16xf32>
    %c52 = arith.constant 52 : index
    %232 = memref.load %arg0[%c52] : memref<54xf32, #tpu.memory_space<smem>>
    %233 = vector.broadcast %232 : f32 to vector<2x14x16xf32>
    %234 = arith.mulf %233, %215 : vector<2x14x16xf32>
    %235 = arith.addf %209, %234 : vector<2x14x16xf32>
    %c53 = arith.constant 53 : index
    %236 = memref.load %arg0[%c53] : memref<54xf32, #tpu.memory_space<smem>>
    %237 = vector.broadcast %236 : f32 to vector<2x14x16xf32>
    %238 = arith.mulf %237, %215 : vector<2x14x16xf32>
    %239 = arith.addf %213, %238 : vector<2x14x16xf32>
    %240 = vector.extract_strided_slice %219 {offsets = [0, 0, 0], sizes = [2, 14, 14], strides = [1, 1, 1]} : vector<2x14x16xf32> to vector<2x14x14xf32>
    %c0_41 = arith.constant 0 : index
    %241 = memref.load %arg1[%c0_41] : memref<2xf32, #tpu.memory_space<smem>>
    %242 = vector.broadcast %241 : f32 to vector<2x14x14xf32>
    %243 = arith.addf %240, %242 : vector<2x14x14xf32>
    %244 = vector.extract_strided_slice %223 {offsets = [0, 0, 1], sizes = [2, 14, 14], strides = [1, 1, 1]} : vector<2x14x16xf32> to vector<2x14x14xf32>
    %245 = arith.addf %243, %244 : vector<2x14x14xf32>
    %246 = vector.extract_strided_slice %227 {offsets = [0, 0, 2], sizes = [2, 14, 14], strides = [1, 1, 1]} : vector<2x14x16xf32> to vector<2x14x14xf32>
    %247 = arith.addf %245, %246 : vector<2x14x14xf32>
    %cst_42 = arith.constant 0.000000e+00 : f32
    %248 = vector.broadcast %cst_42 : f32 to vector<2x14x14xf32>
    %249 = arith.cmpf oge, %247, %248 : vector<2x14x14xf32>
    %cst_43 = arith.constant 3.300000e-01 : f32
    %250 = vector.broadcast %cst_43 : f32 to vector<2x14x14xf32>
    %251 = arith.mulf %250, %247 : vector<2x14x14xf32>
    %252 = arith.select %249, %247, %251 : vector<2x14x14xi1>, vector<2x14x14xf32>
    %c0_44 = arith.constant 0 : index
    %c0_45 = arith.constant 0 : index
    %c0_46 = arith.constant 0 : index
    %c0_47 = arith.constant 0 : index
    %253 = vector.load %arg3[%c0_44, %c0_45, %c0_46, %c0_47] : memref<2x2x14x14xf32, #tpu.memory_space<vmem>>, vector<2x1x14x14xf32>
    %254 = vector.shape_cast %253 : vector<2x1x14x14xf32> to vector<2x14x14xf32>
    %255 = vector.shape_cast %252 : vector<2x14x14xf32> to vector<2x1x14x14xf32>
    tpu.vector_store %arg3[%c0_44, %c0_45, %c0_46, %c0_47], %255 {strides = array<i32>} : memref<2x2x14x14xf32, #tpu.memory_space<vmem>>, vector<2x1x14x14xf32>,
    %256 = vector.extract_strided_slice %231 {offsets = [0, 0, 0], sizes = [2, 14, 14], strides = [1, 1, 1]} : vector<2x14x16xf32> to vector<2x14x14xf32>
    %c1_48 = arith.constant 1 : index
    %257 = memref.load %arg1[%c1_48] : memref<2xf32, #tpu.memory_space<smem>>
    %258 = vector.broadcast %257 : f32 to vector<2x14x14xf32>
    %259 = arith.addf %256, %258 : vector<2x14x14xf32>
    %260 = vector.extract_strided_slice %235 {offsets = [0, 0, 1], sizes = [2, 14, 14], strides = [1, 1, 1]} : vector<2x14x16xf32> to vector<2x14x14xf32>
    %261 = arith.addf %259, %260 : vector<2x14x14xf32>
    %262 = vector.extract_strided_slice %239 {offsets = [0, 0, 2], sizes = [2, 14, 14], strides = [1, 1, 1]} : vector<2x14x16xf32> to vector<2x14x14xf32>
    %263 = arith.addf %261, %262 : vector<2x14x14xf32>
    %cst_49 = arith.constant 0.000000e+00 : f32
    %264 = vector.broadcast %cst_49 : f32 to vector<2x14x14xf32>
    %265 = arith.cmpf oge, %263, %264 : vector<2x14x14xf32>
    %cst_50 = arith.constant 3.300000e-01 : f32
    %266 = vector.broadcast %cst_50 : f32 to vector<2x14x14xf32>
    %267 = arith.mulf %266, %263 : vector<2x14x14xf32>
    %268 = arith.select %265, %263, %267 : vector<2x14x14xi1>, vector<2x14x14xf32>
    %c0_51 = arith.constant 0 : index
    %c1_52 = arith.constant 1 : index
    %c0_53 = arith.constant 0 : index
    %c0_54 = arith.constant 0 : index
    %269 = vector.load %arg3[%c0_51, %c1_52, %c0_53, %c0_54] : memref<2x2x14x14xf32, #tpu.memory_space<vmem>>, vector<2x1x14x14xf32>
    %270 = vector.shape_cast %269 : vector<2x1x14x14xf32> to vector<2x14x14xf32>
    %271 = vector.shape_cast %268 : vector<2x14x14xf32> to vector<2x1x14x14xf32>
    tpu.vector_store %arg3[%c0_51, %c1_52, %c0_53, %c0_54], %271 {strides = array<i32>} : memref<2x2x14x14xf32, #tpu.memory_space<vmem>>, vector<2x1x14x14xf32>,
    return
  }
}

</mosaic_0001>

<llo_original>
// kernel: conv_bn_lrelu.1
$region0: #{conv_bn_lrelu.1}
  #allocation0 [shape = 'u32[]', space=smem, size = 0x4, offset = 0x4, fixed_abs, tag = 'smem constant byte address 0x4 - core index']
  #allocation1 [shape = 'u32[144,128]{1,0:T(1,128)}', space=vmem, size = 0x12000, scoped, tag = 'internal scratch']
  %s0 = inlined_call_operand.vmem [shape: f32[54], index: 0, kind: input, shape index: {}]
  %s1 = inlined_call_operand.vmem [shape: f32[2], index: 1, kind: input, shape index: {}]
  %s2 = inlined_call_operand.vmem [shape: f32[2,3,16,16], index: 2, kind: input, shape index: {}]
  %s3 = inlined_call_operand.vmem [shape: f32[2,2,14,14], index: 3, kind: output, shape index: {}]
  %s4 = sld [smem:[#allocation0]]
  $region30: #{conv_bn_lrelu.1} parent=0
    _
  %s6 = ssub.s32 1, %s4
  %s7 = scalar_select 0, %s6, %s4
  $region1: #{conv_bn_lrelu.1} parent=0
    #allocation2 [shape = 'u8[512]{0}', space=smem, size = 0x200, scoped, tag = 'input window, operand 0, single buffered']
    #allocation3 [shape = 's32[1]{0}', space=sflag, size = 0x4, scoped, tag = 'scoped memory for conv_bn_lrelu.1']
    #allocation4 [shape = 'u8[512]{0}', space=smem, size = 0x200, scoped, tag = 'input window, operand 1, single buffered']
    #allocation5 [shape = 's32[1]{0}', space=sflag, size = 0x4, scoped, tag = 'scoped memory for conv_bn_lrelu.1']
    %8 = vsyncpa [#allocation3], 0
    %9 = vsyncpa [#allocation5], 0
    // Predicated region
    $region2: #{conv_bn_lrelu.1} parent=1 // pred_check
      _
    $region3: #{conv_bn_lrelu.1} parent=1 // pred_check_branch
      %11 = sbr.rel (0) target = $region5
    $region4: #{conv_bn_lrelu.1} parent=1 // pred_region
      %s13 = ssub.s32 16, 16
      %14 = vsyncadd [#allocation3], %s13
      %s16 = sshll.u32 %s0, 4
      %s17 = int_to_ptr.vmem [resolvable:$true] %s16
      %19 = dma.vmem_to_smem %s17, 16, [#allocation2], [#allocation3]
    $region5: #{conv_bn_lrelu.1} parent=1 // pred_fallthru
      _
    // Predicated region
    $region6: #{conv_bn_lrelu.1} parent=1 // pred_check
      _
    $region7: #{conv_bn_lrelu.1} parent=1 // pred_check_branch
      %21 = sbr.rel (0) target = $region9
    $region8: #{conv_bn_lrelu.1} parent=1 // pred_region
      %s23 = ssub.s32 16, 16
      %24 = vsyncadd [#allocation5], %s23
      %s26 = sshll.u32 %s1, 4
      %s27 = int_to_ptr.vmem [resolvable:$true] %s26
      %29 = dma.vmem_to_smem %s27, 16, [#allocation4], [#allocation5]
    $region9: #{conv_bn_lrelu.1} parent=1 // pred_fallthru
      _
    // Predicated region
    $region10: #{conv_bn_lrelu.1} parent=1 // pred_check
      _
    $region11: #{conv_bn_lrelu.1} parent=1 // pred_check_branch
      %31 = sbr.rel (0) target = $region13
    $region12: #{conv_bn_lrelu.1} parent=1 // pred_region
      _
    $region13: #{conv_bn_lrelu.1} parent=1 // pred_fallthru
      _
    // Predicated region
    $region14: #{conv_bn_lrelu.1} parent=1 // pred_check
      _
    $region15: #{conv_bn_lrelu.1} parent=1 // pred_check_branch
      %33 = sbr.rel (0) target = $region17
    $region16: #{conv_bn_lrelu.1} parent=1 // pred_region
      %34 = dma.done [#allocation3], 16
    $region17: #{conv_bn_lrelu.1} parent=1 // pred_fallthru
      _
    // Predicated region
    $region18: #{conv_bn_lrelu.1} parent=1 // pred_check
      _
    $region19: #{conv_bn_lrelu.1} parent=1 // pred_check_branch
      %36 = sbr.rel (0) target = $region21
    $region20: #{conv_bn_lrelu.1} parent=1 // pred_region
      %37 = dma.done [#allocation5], 16
    $region21: #{conv_bn_lrelu.1} parent=1 // pred_fallthru
      _
    %38 = sfence
    %v39 = vld [vmem:[%s2] sm:$0xff]
    %v40 = vld [vmem:[%s2 + $0x8] sm:$0x3f]
    %v41 = vld [vmem:[%s2 + $0x30] sm:$0xff]
    %v42 = vld [vmem:[%s2 + $0x38] sm:$0x3f]
    %s43 = sld [smem:[#allocation2]]
    %v44 = vstv %s43
    %v45 = vmul.f32 %v44, %v39
    %v46 = vmul.f32 %v44, %v40
    %v47 = vmul.f32 %v44, %v41
    %v48 = vmul.f32 %v44, %v42
    %v49 = vadd.f32 %v45, 0.0
    %v50 = vadd.f32 %v46, 0.0
    %v51 = vadd.f32 %v47, 0.0
    %v52 = vadd.f32 %v48, 0.0
    %s53 = sld [smem:[#allocation2 + $0x1]]
    %v54 = vstv %s53
    %v55 = vmul.f32 %v54, %v39
    %v56 = vmul.f32 %v54, %v40
    %v57 = vmul.f32 %v54, %v41
    %v58 = vmul.f32 %v54, %v42
    %v59 = vadd.f32 %v55, 0.0
    %v60 = vadd.f32 %v56, 0.0
    %v61 = vadd.f32 %v57, 0.0
    %v62 = vadd.f32 %v58, 0.0
    %s63 = sld [smem:[#allocation2 + $0x2]]
    %v64 = vstv %s63
    %v65 = vmul.f32 %v64, %v39
    %v66 = vmul.f32 %v64, %v40
    %v67 = vmul.f32 %v64, %v41
    %v68 = vmul.f32 %v64, %v42
    %v69 = vadd.f32 %v65, 0.0
    %v70 = vadd.f32 %v66, 0.0
    %v71 = vadd.f32 %v67, 0.0
    %v72 = vadd.f32 %v68, 0.0
    %s73 = sld [smem:[#allocation2 + $0x1b]]
    %v74 = vstv %s73
    %v75 = vmul.f32 %v74, %v39
    %v76 = vmul.f32 %v74, %v40
    %v77 = vmul.f32 %v74, %v41
    %v78 = vmul.f32 %v74, %v42
    %v79 = vadd.f32 %v75, 0.0
    %v80 = vadd.f32 %v76, 0.0
    %v81 = vadd.f32 %v77, 0.0
    %v82 = vadd.f32 %v78, 0.0
    %s83 = sld [smem:[#allocation2 + $0x1c]]
    %v84 = vstv %s83
    %v85 = vmul.f32 %v84, %v39
    %v86 = vmul.f32 %v84, %v40
    %v87 = vmul.f32 %v84, %v41
    %v88 = vmul.f32 %v84, %v42
    %v89 = vadd.f32 %v85, 0.0
    %v90 = vadd.f32 %v86, 0.0
    %v91 = vadd.f32 %v87, 0.0
    %v92 = vadd.f32 %v88, 0.0
    %s93 = sld [smem:[#allocation2 + $0x1d]]
    %v94 = vstv %s93
    %v95 = vmul.f32 %v94, %v39
    %v96 = vmul.f32 %v94, %v40
    %v97 = vmul.f32 %v94, %v41
    %v98 = vmul.f32 %v94, %v42
    %v99 = vadd.f32 %v95, 0.0
    %v100 = vadd.f32 %v96, 0.0
    %v101 = vadd.f32 %v97, 0.0
    %v102 = vadd.f32 %v98, 0.0
    %v103 = vld [vmem:[%s2 + $0x1] sm:$0xff]
    %v104 = vld [vmem:[%s2 + $0x9] sm:$0x3f]
    %v105 = vld [vmem:[%s2 + $0x31] sm:$0xff]
    %v106 = vld [vmem:[%s2 + $0x39] sm:$0x3f]
    %s107 = sld [smem:[#allocation2 + $0x3]]
    %v108 = vstv %s107
    %v109 = vmul.f32 %v108, %v103
    %v110 = vmul.f32 %v108, %v104
    %v111 = vmul.f32 %v108, %v105
    %v112 = vmul.f32 %v108, %v106
    %v113 = vadd.f32 %v49, %v109
    %v114 = vadd.f32 %v50, %v110
    %v115 = vadd.f32 %v51, %v111
    %v116 = vadd.f32 %v52, %v112
    %s117 = sld [smem:[#allocation2 + $0x4]]
    %v118 = vstv %s117
    %v119 = vmul.f32 %v118, %v103
    %v120 = vmul.f32 %v118, %v104
    %v121 = vmul.f32 %v118, %v105
    %v122 = vmul.f32 %v118, %v106
    %v123 = vadd.f32 %v59, %v119
    %v124 = vadd.f32 %v60, %v120
    %v125 = vadd.f32 %v61, %v121
    %v126 = vadd.f32 %v62, %v122
    %s127 = sld [smem:[#allocation2 + $0x5]]
    %v128 = vstv %s127
    %v129 = vmul.f32 %v128, %v103
    %v130 = vmul.f32 %v128, %v104
    %v131 = vmul.f32 %v128, %v105
    %v132 = vmul.f32 %v128, %v106
    %v133 = vadd.f32 %v69, %v129
    %v134 = vadd.f32 %v70, %v130
    %v135 = vadd.f32 %v71, %v131
    %v136 = vadd.f32 %v72, %v132
    %s137 = sld [smem:[#allocation2 + $0x1e]]
    %v138 = vstv %s137
    %v139 = vmul.f32 %v138, %v103
    %v140 = vmul.f32 %v138, %v104
    %v141 = vmul.f32 %v138, %v105
    %v142 = vmul.f32 %v138, %v106
    %v143 = vadd.f32 %v79, %v139
    %v144 = vadd.f32 %v80, %v140
    %v145 = vadd.f32 %v81, %v141
    %v146 = vadd.f32 %v82, %v142
    %s147 = sld [smem:[#allocation2 + $0x1f]]
    %v148 = vstv %s147
    %v149 = vmul.f32 %v148, %v103
    %v150 = vmul.f32 %v148, %v104
    %v151 = vmul.f32 %v148, %v105
    %v152 = vmul.f32 %v148, %v106
    %v153 = vadd.f32 %v89, %v149
    %v154 = vadd.f32 %v90, %v150
    %v155 = vadd.f32 %v91, %v151
    %v156 = vadd.f32 %v92, %v152
    %s157 = sld [smem:[#allocation2 + $0x20]]
    %v158 = vstv %s157
    %v159 = vmul.f32 %v158, %v103
    %v160 = vmul.f32 %v158, %v104
    %v161 = vmul.f32 %v158, %v105
    %v162 = vmul.f32 %v158, %v106
    %v163 = vadd.f32 %v99, %v159
    %v164 = vadd.f32 %v100, %v160
    %v165 = vadd.f32 %v101, %v161
    %v166 = vadd.f32 %v102, %v162
    %v167 = vld [vmem:[%s2 + $0x2] sm:$0xff]
    %v168 = vld [vmem:[%s2 + $0xa] sm:$0x3f]
    %v169 = vld [vmem:[%s2 + $0x32] sm:$0xff]
    %v170 = vld [vmem:[%s2 + $0x3a] sm:$0x3f]
    %s171 = sld [smem:[#allocation2 + $0x6]]
    %v172 = vstv %s171
    %v173 = vmul.f32 %v172, %v167
    %v174 = vmul.f32 %v172, %v168
    %v175 = vmul.f32 %v172, %v169
    %v176 = vmul.f32 %v172, %v170
    %v177 = vadd.f32 %v113, %v173
    %v178 = vadd.f32 %v114, %v174
    %v179 = vadd.f32 %v115, %v175
    %v180 = vadd.f32 %v116, %v176
    %s181 = sld [smem:[#allocation2 + $0x7]]
    %v182 = vstv %s181
    %v183 = vmul.f32 %v182, %v167
    %v184 = vmul.f32 %v182, %v168
    %v185 = vmul.f32 %v182, %v169
    %v186 = vmul.f32 %v182, %v170
    %v187 = vadd.f32 %v123, %v183
    %v188 = vadd.f32 %v124, %v184
    %v189 = vadd.f32 %v125, %v185
    %v190 = vadd.f32 %v126, %v186
    %s191 = sld [smem:[#allocation2 + $0x8]]
    %v192 = vstv %s191
    %v193 = vmul.f32 %v192, %v167
    %v194 = vmul.f32 %v192, %v168
    %v195 = vmul.f32 %v192, %v169
    %v196 = vmul.f32 %v192, %v170
    %v197 = vadd.f32 %v133, %v193
    %v198 = vadd.f32 %v134, %v194
    %v199 = vadd.f32 %v135, %v195
    %v200 = vadd.f32 %v136, %v196
    %s201 = sld [smem:[#allocation2 + $0x21]]
    %v202 = vstv %s201
    %v203 = vmul.f32 %v202, %v167
    %v204 = vmul.f32 %v202, %v168
    %v205 = vmul.f32 %v202, %v169
    %v206 = vmul.f32 %v202, %v170
    %v207 = vadd.f32 %v143, %v203
    %v208 = vadd.f32 %v144, %v204
    %v209 = vadd.f32 %v145, %v205
    %v210 = vadd.f32 %v146, %v206
    %s211 = sld [smem:[#allocation2 + $0x22]]
    %v212 = vstv %s211
    %v213 = vmul.f32 %v212, %v167
    %v214 = vmul.f32 %v212, %v168
    %v215 = vmul.f32 %v212, %v169
    %v216 = vmul.f32 %v212, %v170
    %v217 = vadd.f32 %v153, %v213
    %v218 = vadd.f32 %v154, %v214
    %v219 = vadd.f32 %v155, %v215
    %v220 = vadd.f32 %v156, %v216
    %s221 = sld [smem:[#allocation2 + $0x23]]
    %v222 = vstv %s221
    %v223 = vmul.f32 %v222, %v167
    %v224 = vmul.f32 %v222, %v168
    %v225 = vmul.f32 %v222, %v169
    %v226 = vmul.f32 %v222, %v170
    %v227 = vadd.f32 %v163, %v223
    %v228 = vadd.f32 %v164, %v224
    %v229 = vadd.f32 %v165, %v225
    %v230 = vadd.f32 %v166, %v226
    %s231 = scalar_lea.vmem %s2, 16
    %v232 = vld [vmem:[%s231] sm:$0xff]
    %v233 = vld [vmem:[%s231 + $0x8] sm:$0x3f]
    %v234 = vld [vmem:[%s231 + $0x30] sm:$0xff]
    %v235 = vld [vmem:[%s231 + $0x38] sm:$0x3f]
    %s236 = sld [smem:[#allocation2 + $0x9]]
    %v237 = vstv %s236
    %v238 = vmul.f32 %v237, %v232
    %v239 = vmul.f32 %v237, %v233
    %v240 = vmul.f32 %v237, %v234
    %v241 = vmul.f32 %v237, %v235
    %v242 = vadd.f32 %v177, %v238
    %v243 = vadd.f32 %v178, %v239
    %v244 = vadd.f32 %v179, %v240
    %v245 = vadd.f32 %v180, %v241
    %s246 = sld [smem:[#allocation2 + $0xa]]
    %v247 = vstv %s246
    %v248 = vmul.f32 %v247, %v232
    %v249 = vmul.f32 %v247, %v233
    %v250 = vmul.f32 %v247, %v234
    %v251 = vmul.f32 %v247, %v235
    %v252 = vadd.f32 %v187, %v248
    %v253 = vadd.f32 %v188, %v249
    %v254 = vadd.f32 %v189, %v250
    %v255 = vadd.f32 %v190, %v251
    %s256 = sld [smem:[#allocation2 + $0xb]]
    %v257 = vstv %s256
    %v258 = vmul.f32 %v257, %v232
    %v259 = vmul.f32 %v257, %v233
    %v260 = vmul.f32 %v257, %v234
    %v261 = vmul.f32 %v257, %v235
    %v262 = vadd.f32 %v197, %v258
    %v263 = vadd.f32 %v198, %v259
    %v264 = vadd.f32 %v199, %v260
    %v265 = vadd.f32 %v200, %v261
    %s266 = sld [smem:[#allocation2 + $0x24]]
    %v267 = vstv %s266
    %v268 = vmul.f32 %v267, %v232
    %v269 = vmul.f32 %v267, %v233
    %v270 = vmul.f32 %v267, %v234
    %v271 = vmul.f32 %v267, %v235
    %v272 = vadd.f32 %v207, %v268
    %v273 = vadd.f32 %v208, %v269
    %v274 = vadd.f32 %v209, %v270
    %v275 = vadd.f32 %v210, %v271
    %s276 = sld [smem:[#allocation2 + $0x25]]
    %v277 = vstv %s276
    %v278 = vmul.f32 %v277, %v232
    %v279 = vmul.f32 %v277, %v233
    %v280 = vmul.f32 %v277, %v234
    %v281 = vmul.f32 %v277, %v235
    %v282 = vadd.f32 %v217, %v278
    %v283 = vadd.f32 %v218, %v279
    %v284 = vadd.f32 %v219, %v280
    %v285 = vadd.f32 %v220, %v281
    %s286 = sld [smem:[#allocation2 + $0x26]]
    %v287 = vstv %s286
    %v288 = vmul.f32 %v287, %v232
    %v289 = vmul.f32 %v287, %v233
    %v290 = vmul.f32 %v287, %v234
    %v291 = vmul.f32 %v287, %v235
    %v292 = vadd.f32 %v227, %v288
    %v293 = vadd.f32 %v228, %v289
    %v294 = vadd.f32 %v229, %v290
    %v295 = vadd.f32 %v230, %v291
    %v296 = vld [vmem:[%s231 + $0x1] sm:$0xff]
    %v297 = vld [vmem:[%s231 + $0x9] sm:$0x3f]
    %v298 = vld [vmem:[%s231 + $0x31] sm:$0xff]
    %v299 = vld [vmem:[%s231 + $0x39] sm:$0x3f]
    %s300 = sld [smem:[#allocation2 + $0xc]]
    %v301 = vstv %s300
    %v302 = vmul.f32 %v301, %v296
    %v303 = vmul.f32 %v301, %v297
    %v304 = vmul.f32 %v301, %v298
    %v305 = vmul.f32 %v301, %v299
    %v306 = vadd.f32 %v242, %v302
    %v307 = vadd.f32 %v243, %v303
    %v308 = vadd.f32 %v244, %v304
    %v309 = vadd.f32 %v245, %v305
    %s310 = sld [smem:[#allocation2 + $0xd]]
    %v311 = vstv %s310
    %v312 = vmul.f32 %v311, %v296
    %v313 = vmul.f32 %v311, %v297
    %v314 = vmul.f32 %v311, %v298
    %v315 = vmul.f32 %v311, %v299
    %v316 = vadd.f32 %v252, %v312
    %v317 = vadd.f32 %v253, %v313
    %v318 = vadd.f32 %v254, %v314
    %v319 = vadd.f32 %v255, %v315
    %s320 = sld [smem:[#allocation2 + $0xe]]
    %v321 = vstv %s320
    %v322 = vmul.f32 %v321, %v296
    %v323 = vmul.f32 %v321, %v297
    %v324 = vmul.f32 %v321, %v298
    %v325 = vmul.f32 %v321, %v299
    %v326 = vadd.f32 %v262, %v322
    %v327 = vadd.f32 %v263, %v323
    %v328 = vadd.f32 %v264, %v324
    %v329 = vadd.f32 %v265, %v325
    %s330 = sld [smem:[#allocation2 + $0x27]]
    %v331 = vstv %s330
    %v332 = vmul.f32 %v331, %v296
    %v333 = vmul.f32 %v331, %v297
    %v334 = vmul.f32 %v331, %v298
    %v335 = vmul.f32 %v331, %v299
    %v336 = vadd.f32 %v272, %v332
    %v337 = vadd.f32 %v273, %v333
    %v338 = vadd.f32 %v274, %v334
    %v339 = vadd.f32 %v275, %v335
    %s340 = sld [smem:[#allocation2 + $0x28]]
    %v341 = vstv %s340
    %v342 = vmul.f32 %v341, %v296
    %v343 = vmul.f32 %v341, %v297
    %v344 = vmul.f32 %v341, %v298
    %v345 = vmul.f32 %v341, %v299
    %v346 = vadd.f32 %v282, %v342
    %v347 = vadd.f32 %v283, %v343
    %v348 = vadd.f32 %v284, %v344
    %v349 = vadd.f32 %v285, %v345
    %s350 = sld [smem:[#allocation2 + $0x29]]
    %v351 = vstv %s350
    %v352 = vmul.f32 %v351, %v296
    %v353 = vmul.f32 %v351, %v297
    %v354 = vmul.f32 %v351, %v298
    %v355 = vmul.f32 %v351, %v299
    %v356 = vadd.f32 %v292, %v352
    %v357 = vadd.f32 %v293, %v353
    %v358 = vadd.f32 %v294, %v354
    %v359 = vadd.f32 %v295, %v355
    %v360 = vld [vmem:[%s231 + $0x2] sm:$0xff]
    %v361 = vld [vmem:[%s231 + $0xa] sm:$0x3f]
    %v362 = vld [vmem:[%s231 + $0x32] sm:$0xff]
    %v363 = vld [vmem:[%s231 + $0x3a] sm:$0x3f]
    %s364 = sld [smem:[#allocation2 + $0xf]]
    %v365 = vstv %s364
    %v366 = vmul.f32 %v365, %v360
    %v367 = vmul.f32 %v365, %v361
    %v368 = vmul.f32 %v365, %v362
    %v369 = vmul.f32 %v365, %v363
    %v370 = vadd.f32 %v306, %v366
    %v371 = vadd.f32 %v307, %v367
    %v372 = vadd.f32 %v308, %v368
    %v373 = vadd.f32 %v309, %v369
    %s374 = sld [smem:[#allocation2 + $0x10]]
    %v375 = vstv %s374
    %v376 = vmul.f32 %v375, %v360
    %v377 = vmul.f32 %v375, %v361
    %v378 = vmul.f32 %v375, %v362
    %v379 = vmul.f32 %v375, %v363
    %v380 = vadd.f32 %v316, %v376
    %v381 = vadd.f32 %v317, %v377
    %v382 = vadd.f32 %v318, %v378
    %v383 = vadd.f32 %v319, %v379
    %s384 = sld [smem:[#allocation2 + $0x11]]
    %v385 = vstv %s384
    %v386 = vmul.f32 %v385, %v360
    %v387 = vmul.f32 %v385, %v361
    %v388 = vmul.f32 %v385, %v362
    %v389 = vmul.f32 %v385, %v363
    %v390 = vadd.f32 %v326, %v386
    %v391 = vadd.f32 %v327, %v387
    %v392 = vadd.f32 %v328, %v388
    %v393 = vadd.f32 %v329, %v389
    %s394 = sld [smem:[#allocation2 + $0x2a]]
    %v395 = vstv %s394
    %v396 = vmul.f32 %v395, %v360
    %v397 = vmul.f32 %v395, %v361
    %v398 = vmul.f32 %v395, %v362
    %v399 = vmul.f32 %v395, %v363
    %v400 = vadd.f32 %v336, %v396
    %v401 = vadd.f32 %v337, %v397
    %v402 = vadd.f32 %v338, %v398
    %v403 = vadd.f32 %v339, %v399
    %s404 = sld [smem:[#allocation2 + $0x2b]]
    %v405 = vstv %s404
    %v406 = vmul.f32 %v405, %v360
    %v407 = vmul.f32 %v405, %v361
    %v408 = vmul.f32 %v405, %v362
    %v409 = vmul.f32 %v405, %v363
    %v410 = vadd.f32 %v346, %v406
    %v411 = vadd.f32 %v347, %v407
    %v412 = vadd.f32 %v348, %v408
    %v413 = vadd.f32 %v349, %v409
    %s414 = sld [smem:[#allocation2 + $0x2c]]
    %v415 = vstv %s414
    %v416 = vmul.f32 %v415, %v360
    %v417 = vmul.f32 %v415, %v361
    %v418 = vmul.f32 %v415, %v362
    %v419 = vmul.f32 %v415, %v363
    %v420 = vadd.f32 %v356, %v416
    %v421 = vadd.f32 %v357, %v417
    %v422 = vadd.f32 %v358, %v418
    %v423 = vadd.f32 %v359, %v419
    %s424 = scalar_lea.vmem %s2, 32
    %v425 = vld [vmem:[%s424] sm:$0xff]
    %v426 = vld [vmem:[%s424 + $0x8] sm:$0x3f]
    %v427 = vld [vmem:[%s424 + $0x30] sm:$0xff]
    %v428 = vld [vmem:[%s424 + $0x38] sm:$0x3f]
    %s429 = sld [smem:[#allocation2 + $0x12]]
    %v430 = vstv %s429
    %v431 = vmul.f32 %v430, %v425
    %v432 = vmul.f32 %v430, %v426
    %v433 = vmul.f32 %v430, %v427
    %v434 = vmul.f32 %v430, %v428
    %v435 = vadd.f32 %v370, %v431
    %v436 = vadd.f32 %v371, %v432
    %v437 = vadd.f32 %v372, %v433
    %v438 = vadd.f32 %v373, %v434
    %s439 = sld [smem:[#allocation2 + $0x13]]
    %v440 = vstv %s439
    %v441 = vmul.f32 %v440, %v425
    %v442 = vmul.f32 %v440, %v426
    %v443 = vmul.f32 %v440, %v427
    %v444 = vmul.f32 %v440, %v428
    %v445 = vadd.f32 %v380, %v441
    %v446 = vadd.f32 %v381, %v442
    %v447 = vadd.f32 %v382, %v443
    %v448 = vadd.f32 %v383, %v444
    %s449 = sld [smem:[#allocation2 + $0x14]]
    %v450 = vstv %s449
    %v451 = vmul.f32 %v450, %v425
    %v452 = vmul.f32 %v450, %v426
    %v453 = vmul.f32 %v450, %v427
    %v454 = vmul.f32 %v450, %v428
    %v455 = vadd.f32 %v390, %v451
    %v456 = vadd.f32 %v391, %v452
    %v457 = vadd.f32 %v392, %v453
    %v458 = vadd.f32 %v393, %v454
    %s459 = sld [smem:[#allocation2 + $0x2d]]
    %v460 = vstv %s459
    %v461 = vmul.f32 %v460, %v425
    %v462 = vmul.f32 %v460, %v426
    %v463 = vmul.f32 %v460, %v427
    %v464 = vmul.f32 %v460, %v428
    %v465 = vadd.f32 %v400, %v461
    %v466 = vadd.f32 %v401, %v462
    %v467 = vadd.f32 %v402, %v463
    %v468 = vadd.f32 %v403, %v464
    %s469 = sld [smem:[#allocation2 + $0x2e]]
    %v470 = vstv %s469
    %v471 = vmul.f32 %v470, %v425
    %v472 = vmul.f32 %v470, %v426
    %v473 = vmul.f32 %v470, %v427
    %v474 = vmul.f32 %v470, %v428
    %v475 = vadd.f32 %v410, %v471
    %v476 = vadd.f32 %v411, %v472
    %v477 = vadd.f32 %v412, %v473
    %v478 = vadd.f32 %v413, %v474
    %s479 = sld [smem:[#allocation2 + $0x2f]]
    %v480 = vstv %s479
    %v481 = vmul.f32 %v480, %v425
    %v482 = vmul.f32 %v480, %v426
    %v483 = vmul.f32 %v480, %v427
    %v484 = vmul.f32 %v480, %v428
    %v485 = vadd.f32 %v420, %v481
    %v486 = vadd.f32 %v421, %v482
    %v487 = vadd.f32 %v422, %v483
    %v488 = vadd.f32 %v423, %v484
    %v489 = vld [vmem:[%s424 + $0x1] sm:$0xff]
    %v490 = vld [vmem:[%s424 + $0x9] sm:$0x3f]
    %v491 = vld [vmem:[%s424 + $0x31] sm:$0xff]
    %v492 = vld [vmem:[%s424 + $0x39] sm:$0x3f]
    %s493 = sld [smem:[#allocation2 + $0x15]]
    %v494 = vstv %s493
    %v495 = vmul.f32 %v494, %v489
    %v496 = vmul.f32 %v494, %v490
    %v497 = vmul.f32 %v494, %v491
    %v498 = vmul.f32 %v494, %v492
    %v499 = vadd.f32 %v435, %v495
    %v500 = vadd.f32 %v436, %v496
    %v501 = vadd.f32 %v437, %v497
    %v502 = vadd.f32 %v438, %v498
    %s503 = sld [smem:[#allocation2 + $0x16]]
    %v504 = vstv %s503
    %v505 = vmul.f32 %v504, %v489
    %v506 = vmul.f32 %v504, %v490
    %v507 = vmul.f32 %v504, %v491
    %v508 = vmul.f32 %v504, %v492
    %v509 = vadd.f32 %v445, %v505
    %v510 = vadd.f32 %v446, %v506
    %v511 = vadd.f32 %v447, %v507
    %v512 = vadd.f32 %v448, %v508
    %s513 = sld [smem:[#allocation2 + $0x17]]
    %v514 = vstv %s513
    %v515 = vmul.f32 %v514, %v489
    %v516 = vmul.f32 %v514, %v490
    %v517 = vmul.f32 %v514, %v491
    %v518 = vmul.f32 %v514, %v492
    %v519 = vadd.f32 %v455, %v515
    %v520 = vadd.f32 %v456, %v516
    %v521 = vadd.f32 %v457, %v517
    %v522 = vadd.f32 %v458, %v518
    %s523 = sld [smem:[#allocation2 + $0x30]]
    %v524 = vstv %s523
    %v525 = vmul.f32 %v524, %v489
    %v526 = vmul.f32 %v524, %v490
    %v527 = vmul.f32 %v524, %v491
    %v528 = vmul.f32 %v524, %v492
    %v529 = vadd.f32 %v465, %v525
    %v530 = vadd.f32 %v466, %v526
    %v531 = vadd.f32 %v467, %v527
    %v532 = vadd.f32 %v468, %v528
    %s533 = sld [smem:[#allocation2 + $0x31]]
    %v534 = vstv %s533
    %v535 = vmul.f32 %v534, %v489
    %v536 = vmul.f32 %v534, %v490
    %v537 = vmul.f32 %v534, %v491
    %v538 = vmul.f32 %v534, %v492
    %v539 = vadd.f32 %v475, %v535
    %v540 = vadd.f32 %v476, %v536
    %v541 = vadd.f32 %v477, %v537
    %v542 = vadd.f32 %v478, %v538
    %s543 = sld [smem:[#allocation2 + $0x32]]
    %v544 = vstv %s543
    %v545 = vmul.f32 %v544, %v489
    %v546 = vmul.f32 %v544, %v490
    %v547 = vmul.f32 %v544, %v491
    %v548 = vmul.f32 %v544, %v492
    %v549 = vadd.f32 %v485, %v545
    %v550 = vadd.f32 %v486, %v546
    %v551 = vadd.f32 %v487, %v547
    %v552 = vadd.f32 %v488, %v548
    %v553 = vld [vmem:[%s424 + $0x2] sm:$0xff]
    %v554 = vld [vmem:[%s424 + $0xa] sm:$0x3f]
    %v555 = vld [vmem:[%s424 + $0x32] sm:$0xff]
    %v556 = vld [vmem:[%s424 + $0x3a] sm:$0x3f]
    %s557 = sld [smem:[#allocation2 + $0x18]]
    %v558 = vstv %s557
    %v559 = vmul.f32 %v558, %v553
    %v560 = vmul.f32 %v558, %v554
    %v561 = vmul.f32 %v558, %v555
    %v562 = vmul.f32 %v558, %v556
    %v563 = vadd.f32 %v499, %v559
    %v564 = vadd.f32 %v500, %v560
    %v565 = vadd.f32 %v501, %v561
    %v566 = vadd.f32 %v502, %v562
    %s567 = sld [smem:[#allocation2 + $0x19]]
    %v568 = vstv %s567
    %v569 = vmul.f32 %v568, %v553
    %v570 = vmul.f32 %v568, %v554
    %v571 = vmul.f32 %v568, %v555
    %v572 = vmul.f32 %v568, %v556
    %v573 = vadd.f32 %v509, %v569
    %v574 = vadd.f32 %v510, %v570
    %v575 = vadd.f32 %v511, %v571
    %v576 = vadd.f32 %v512, %v572
    %s577 = sld [smem:[#allocation2 + $0x1a]]
    %v578 = vstv %s577
    %v579 = vmul.f32 %v578, %v553
    %v580 = vmul.f32 %v578, %v554
    %v581 = vmul.f32 %v578, %v555
    %v582 = vmul.f32 %v578, %v556
    %v583 = vadd.f32 %v519, %v579
    %v584 = vadd.f32 %v520, %v580
    %v585 = vadd.f32 %v521, %v581
    %v586 = vadd.f32 %v522, %v582
    %s587 = sld [smem:[#allocation2 + $0x33]]
    %v588 = vstv %s587
    %v589 = vmul.f32 %v588, %v553
    %v590 = vmul.f32 %v588, %v554
    %v591 = vmul.f32 %v588, %v555
    %v592 = vmul.f32 %v588, %v556
    %v593 = vadd.f32 %v529, %v589
    %v594 = vadd.f32 %v530, %v590
    %v595 = vadd.f32 %v531, %v591
    %v596 = vadd.f32 %v532, %v592
    %s597 = sld [smem:[#allocation2 + $0x34]]
    %v598 = vstv %s597
    %v599 = vmul.f32 %v598, %v553
    %v600 = vmul.f32 %v598, %v554
    %v601 = vmul.f32 %v598, %v555
    %v602 = vmul.f32 %v598, %v556
    %v603 = vadd.f32 %v539, %v599
    %v604 = vadd.f32 %v540, %v600
    %v605 = vadd.f32 %v541, %v601
    %v606 = vadd.f32 %v542, %v602
    %s607 = sld [smem:[#allocation2 + $0x35]]
    %v608 = vstv %s607
    %v609 = vmul.f32 %v608, %v553
    %v610 = vmul.f32 %v608, %v554
    %v611 = vmul.f32 %v608, %v555
    %v612 = vmul.f32 %v608, %v556
    %v613 = vadd.f32 %v549, %v609
    %v614 = vadd.f32 %v550, %v610
    %v615 = vadd.f32 %v551, %v611
    %v616 = vadd.f32 %v552, %v612
    %s617 = sld [smem:[#allocation4]]
    %v618 = vstv %s617
    %v619 = vadd.f32 %v563, %v618
    %v620 = vadd.f32 %v564, %v618
    %v621 = vadd.f32 %v565, %v618
    %v622 = vadd.f32 %v566, %v618
    %627 = vrot.lane.b32.xlu0 %v573, 127
    %v628 = vpop.permute.xlu0 %627
    %629 = vrot.lane.b32.xlu0 %v574, 127
    %v630 = vpop.permute.xlu0 %629
    %631 = vrot.lane.b32.xlu0 %v575, 127
    %v632 = vpop.permute.xlu0 %631
    %633 = vrot.lane.b32.xlu0 %v576, 127
    %v634 = vpop.permute.xlu0 %633
    %v639 = vadd.f32 %v619, %v628
    %v640 = vadd.f32 %v620, %v630
    %v641 = vadd.f32 %v621, %v632
    %v642 = vadd.f32 %v622, %v634
    %647 = vrot.lane.b32.xlu0 %v583, 126
    %v648 = vpop.permute.xlu0 %647
    %649 = vrot.lane.b32.xlu0 %v584, 126
    %v650 = vpop.permute.xlu0 %649
    %651 = vrot.lane.b32.xlu0 %v585, 126
    %v652 = vpop.permute.xlu0 %651
    %653 = vrot.lane.b32.xlu0 %v586, 126
    %v654 = vpop.permute.xlu0 %653
    %v659 = vadd.f32 %v639, %v648
    %v660 = vadd.f32 %v640, %v650
    %v661 = vadd.f32 %v641, %v652
    %v662 = vadd.f32 %v642, %v654
    %vm663 = vcmp.ge.f32.partialorder %v659, 0.0
    %vm664 = vcmp.ge.f32.partialorder %v660, 0.0
    %vm665 = vcmp.ge.f32.partialorder %v661, 0.0
    %vm666 = vcmp.ge.f32.partialorder %v662, 0.0
    %v667 = vmul.f32 %v659, 0.33
    %v668 = vmul.f32 %v660, 0.33
    %v669 = vmul.f32 %v661, 0.33
    %v670 = vmul.f32 %v662, 0.33
    %v671 = vsel %vm663, %v659, %v667
    %v672 = vsel %vm664, %v660, %v668
    %v673 = vsel %vm665, %v661, %v669
    %v674 = vsel %vm666, %v662, %v670
    %vm675 = vcmask 113664
    %676 = vst.msk [vmem:[%s3] sm:$0xff] %vm675, %v671
    %vm677 = vcmask 111616
    %678 = vst.msk [vmem:[%s3 + $0x8] sm:$0x3f] %vm677, %v672
    %679 = vst.msk [vmem:[%s3 + $0x20] sm:$0xff] %vm675, %v673
    %680 = vst.msk [vmem:[%s3 + $0x28] sm:$0x3f] %vm677, %v674
    %s681 = sld [smem:[#allocation4 + $0x1]]
    %v682 = vstv %s681
    %v683 = vadd.f32 %v593, %v682
    %v684 = vadd.f32 %v594, %v682
    %v685 = vadd.f32 %v595, %v682
    %v686 = vadd.f32 %v596, %v682
    %691 = vrot.lane.b32.xlu0 %v603, 127
    %v692 = vpop.permute.xlu0 %691
    %693 = vrot.lane.b32.xlu0 %v604, 127
    %v694 = vpop.permute.xlu0 %693
    %695 = vrot.lane.b32.xlu0 %v605, 127
    %v696 = vpop.permute.xlu0 %695
    %697 = vrot.lane.b32.xlu0 %v606, 127
    %v698 = vpop.permute.xlu0 %697
    %v703 = vadd.f32 %v683, %v692
    %v704 = vadd.f32 %v684, %v694
    %v705 = vadd.f32 %v685, %v696
    %v706 = vadd.f32 %v686, %v698
    %711 = vrot.lane.b32.xlu0 %v613, 126
    %v712 = vpop.permute.xlu0 %711
    %713 = vrot.lane.b32.xlu0 %v614, 126
    %v714 = vpop.permute.xlu0 %713
    %715 = vrot.lane.b32.xlu0 %v615, 126
    %v716 = vpop.permute.xlu0 %715
    %717 = vrot.lane.b32.xlu0 %v616, 126
    %v718 = vpop.permute.xlu0 %717
    %v723 = vadd.f32 %v703, %v712
    %v724 = vadd.f32 %v704, %v714
    %v725 = vadd.f32 %v705, %v716
    %v726 = vadd.f32 %v706, %v718
    %vm727 = vcmp.ge.f32.partialorder %v723, 0.0
    %vm728 = vcmp.ge.f32.partialorder %v724, 0.0
    %vm729 = vcmp.ge.f32.partialorder %v725, 0.0
    %vm730 = vcmp.ge.f32.partialorder %v726, 0.0
    %v731 = vmul.f32 %v723, 0.33
    %v732 = vmul.f32 %v724, 0.33
    %v733 = vmul.f32 %v725, 0.33
    %v734 = vmul.f32 %v726, 0.33
    %v735 = vsel %vm727, %v723, %v731
    %v736 = vsel %vm728, %v724, %v732
    %v737 = vsel %vm729, %v725, %v733
    %v738 = vsel %vm730, %v726, %v734
    %s739 = scalar_lea.vmem %s3, 16
    %740 = vst.msk [vmem:[%s739] sm:$0xff] %vm675, %v735
    %741 = vst.msk [vmem:[%s739 + $0x8] sm:$0x3f] %vm677, %v736
    %742 = vst.msk [vmem:[%s739 + $0x20] sm:$0xff] %vm675, %v737
    %743 = vst.msk [vmem:[%s739 + $0x28] sm:$0x3f] %vm677, %v738
    // Predicated region
    $region22: #{conv_bn_lrelu.1} parent=1 // pred_check
      _
    $region23: #{conv_bn_lrelu.1} parent=1 // pred_check_branch
      %745 = sbr.rel (0) target = $region25
    $region24: #{conv_bn_lrelu.1} parent=1 // pred_region
      _
    $region25: #{conv_bn_lrelu.1} parent=1 // pred_fallthru
      _
    // Predicated region
    $region26: #{conv_bn_lrelu.1} parent=1 // pred_check
      _
    $region27: #{conv_bn_lrelu.1} parent=1 // pred_check_branch
      %747 = sbr.rel (0) target = $region29
    $region28: #{conv_bn_lrelu.1} parent=1 // pred_region
      _
    $region29: #{conv_bn_lrelu.1} parent=1 // pred_fallthru
      _
    %748 = vsyncpa [#allocation3], 1
    %749 = vsyncpa [#allocation5], 1

</llo_original>
